<compile_context>
chip_gen: v7x
topology: tpu7x:2x2x1
jax: 0.10.0
libtpu: 0.0.40
codegen_flags: <defaults>
</compile_context>

<pallas_src>
import functools

import jax
import jax.numpy as jnp
from jax.experimental import pallas as pl
from jax.experimental.pallas import tpu as pltpu

# ---- module constants (from the PyTorch spec) --------------------------------
CIN, COUT = 3, 4
KH = KW = 10
STRIDE = 3
PAD = 6
MIN_V = 0.9          # torch.clamp_min(v1, 0.9)
MAX_V = 0.8          # torch.clamp_max(v2, 0.8)
K = CIN * KH * KW    # 300

_MAX_TILE = 4096     # lane-tile cap along flattened OH*OW (≈4.7 MiB f32/buffer)


def _round_up(x: int, m: int) -> int:
    return (x + m - 1) // m * m


# ---- kernel -------------------------------------------------------------------
def _conv_bias_clamp_kernel(w_ref, b_ref, p_ref, o_ref, *, min_v, max_v):
    # w_ref: (COUT, K)    weight, VMEM-resident across the grid (constant index_map)
    # b_ref: (COUT, 1)    bias, VMEM-resident
    # p_ref: (K, TILE)    im2col patch tile (lane dim = output positions)
    # o_ref: (COUT, TILE) NCHW-flattened output tile
    acc = jnp.dot(w_ref[...], p_ref[...], preferred_element_type=jnp.float32)
    acc = acc + b_ref[...].astype(jnp.float32)          # VPU lane-broadcast add
    acc = jnp.minimum(jnp.maximum(acc, min_v), max_v)   # fused clamp_min -> clamp_max
    o_ref[...] = acc.astype(o_ref.dtype)


# ---- wrapper ------------------------------------------------------------------
@functools.partial(jax.jit, static_argnames=("min_v", "max_v"))
def conv2d_clamp(x, w, b, *, min_v=MIN_V, max_v=MAX_V):
    """x: (N, CIN, H, W)  w: (COUT, CIN, KH, KW)  b: (COUT,) -> (N, COUT, OH, OW)."""
    n, _, h, wdt = x.shape
    oh = (h + 2 * PAD - KH) // STRIDE + 1
    ow = (wdt + 2 * PAD - KW) // STRIDE + 1
    ohow = oh * ow

    # im2col: (N, CIN*KH*KW, OH, OW); feature ordering is (CIN, KH, KW) —
    # exactly PyTorch's weight.reshape(COUT, -1) ordering.
    patches = jax.lax.conv_general_dilated_patches(
        x,
        filter_shape=(KH, KW),
        window_strides=(STRIDE, STRIDE),
        padding=((PAD, PAD), (PAD, PAD)),
    )
    # Pure reshape (no transpose / no slab rebuild): (N, K, OH*OW).
    patches = patches.reshape(n, K, ohow)

    if ohow <= _MAX_TILE:
        # Single full-extent tile per batch image; Mosaic pads layout internally.
        tile = ohow
        ohow_pad = ohow
    else:
        tile = _MAX_TILE
        ohow_pad = _round_up(ohow, tile)
        patches = jnp.pad(patches, ((0, 0), (0, 0), (0, ohow_pad - ohow)))

    w2 = w.reshape(COUT, K).astype(x.dtype)
    b2 = b.reshape(COUT, 1).astype(x.dtype)

    grid = (n, ohow_pad // tile)
    out = pl.pallas_call(
        functools.partial(_conv_bias_clamp_kernel, min_v=min_v, max_v=max_v),
        out_shape=jax.ShapeDtypeStruct((n, COUT, ohow_pad), x.dtype),
        grid_spec=pltpu.PrefetchScalarGridSpec(
            num_scalar_prefetch=0,
            grid=grid,
            in_specs=[
                # constant index_maps -> weight & bias stay resident in VMEM
                pl.BlockSpec((COUT, K), lambda bi, mi: (0, 0)),
                pl.BlockSpec((COUT, 1), lambda bi, mi: (0, 0)),
                pl.BlockSpec((None, K, tile), lambda bi, mi: (bi, 0, mi)),
            ],
            out_specs=pl.BlockSpec((None, COUT, tile), lambda bi, mi: (bi, 0, mi)),
        ),
        compiler_params=pltpu.CompilerParams(
            dimension_semantics=("parallel", "parallel"),
            vmem_limit_bytes=32 * 1024 * 1024,
        ),
    )(w2, b2, patches)

    if ohow_pad != ohow:
        out = out[:, :, :ohow]
    # (N, COUT, OH*OW) -> (N, COUT, OH, OW): pure reshape, already NCHW.
    return out.reshape(n, COUT, oh, ow)


# ---- pure-JAX reference --------------------------------------------------------
def _reference(x, w, b, min_v=MIN_V, max_v=MAX_V):
    y = jax.lax.conv_general_dilated(
        x, w,
        window_strides=(STRIDE, STRIDE),
        padding=((PAD, PAD), (PAD, PAD)),
        dimension_numbers=("NCHW", "OIHW", "NCHW"),
    )
    y = y + b[None, :, None, None]
    return jnp.minimum(jnp.maximum(y, min_v), max_v)


if __name__ == "__main__":
    key = jax.random.PRNGKey(0)
    kx, kw, kb = jax.random.split(key, 3)

    # Input shape from the spec: x1 = torch.randn(1, 3, 42, 49)
    x = jax.random.normal(kx, (1, CIN, 42, 49), dtype=jnp.float32)
    bound = 1.0 / (CIN * KH * KW) ** 0.5
    w = jax.random.uniform(kw, (COUT, CIN, KH, KW), jnp.float32, -bound, bound)
    b = jax.random.uniform(kb, (COUT,), jnp.float32, -bound, bound)

    # Module semantics (clamp_min 0.9 -> clamp_max 0.8: saturates at 0.8).
    out = jax.block_until_ready(conv2d_clamp(x, w, b))
    ref = jax.block_until_ready(_reference(x, w, b))
    assert out.shape == (1, COUT, 15, 18), out.shape
    if not jnp.allclose(out, ref, atol=1e-4, rtol=1e-4):
        raise SystemExit(
            f"MISMATCH (clamped): max abs err = {float(jnp.max(jnp.abs(out - ref)))}"
        )

    # Secondary check with non-saturating bounds so the conv+bias path is
    # actually observable (otherwise every element is the constant 0.8).
    out_open = jax.block_until_ready(conv2d_clamp(x, w, b, min_v=-1e30, max_v=1e30))
    ref_open = jax.block_until_ready(_reference(x, w, b, min_v=-1e30, max_v=1e30))
    if not jnp.allclose(out_open, ref_open, atol=1e-4, rtol=1e-4):
        raise SystemExit(
            f"MISMATCH (conv): max abs err = {float(jnp.max(jnp.abs(out_open - ref_open)))}"
        )

    print("KERNEL_OK")
</pallas_src>

<mosaic_0001>
module attributes {stable_mosaic.version = 11 : i64} {
  func.func @_conv_bias_clamp_kernel(%arg0: i32, %arg1: i32, %arg2: memref<4x300xf32, #tpu.memory_space<vmem>>, %arg3: memref<4x1xf32, #tpu.memory_space<vmem>>, %arg4: memref<1x300x270xf32, #tpu.memory_space<vmem>>, %arg5: memref<1x4x270xf32, #tpu.memory_space<vmem>>) attributes {dimension_semantics = [#tpu.dimension_semantics<parallel>, #tpu.dimension_semantics<parallel>], iteration_bounds = array<i64: 1, 1>, scalar_prefetch = 0 : i64, scratch_operands = 0 : i64, tpu.core_type = #tpu.core_type<tc>, window_params = [{pipeline_mode = #tpu.pipeline_mode<synchronous>, transform_indices = @transform_0, window_bounds = array<i64: 4, 300>}, {pipeline_mode = #tpu.pipeline_mode<synchronous>, transform_indices = @transform_1, window_bounds = array<i64: 4, 1>}, {transform_indices = @transform_2, window_bounds = array<i64: 1, 300, 270>}, {transform_indices = @transform_3, window_bounds = array<i64: 1, 4, 270>}]} {
    %c0 = arith.constant 0 : index
    %c0_0 = arith.constant 0 : index
    %0 = vector.load %arg2[%c0, %c0_0] : memref<4x300xf32, #tpu.memory_space<vmem>>, vector<4x300xf32>
    %c0_1 = arith.constant 0 : index
    %c0_2 = arith.constant 0 : index
    %c0_3 = arith.constant 0 : index
    %1 = vector.load %arg4[%c0_1, %c0_2, %c0_3] : memref<1x300x270xf32, #tpu.memory_space<vmem>>, vector<1x300x270xf32>
    %2 = vector.shape_cast %1 : vector<1x300x270xf32> to vector<300x270xf32>
    %cst = arith.constant dense<0.000000e+00> : vector<4x270xf32>
    %3 = tpu.matmul %0, %2, %cst {dimension_numbers = #tpu.dot_dimension_numbers<[1], [0], [0], [1], [0, 0, 1, 1], [], []>} : vector<4x300xf32>, vector<300x270xf32>, vector<4x270xf32> -> vector<4x270xf32>
    %c0_4 = arith.constant 0 : index
    %c0_5 = arith.constant 0 : index
    %4 = vector.load %arg3[%c0_4, %c0_5] : memref<4x1xf32, #tpu.memory_space<vmem>>, vector<4x1xf32>
    %5 = vector.broadcast %4 : vector<4x1xf32> to vector<4x270xf32>
    %6 = arith.addf %3, %5 : vector<4x270xf32>
    %cst_6 = arith.constant 0.899999976 : f32
    %7 = vector.broadcast %cst_6 : f32 to vector<4x270xf32>
    %8 = arith.maximumf %6, %7 : vector<4x270xf32>
    %cst_7 = arith.constant 8.000000e-01 : f32
    %9 = vector.broadcast %cst_7 : f32 to vector<4x270xf32>
    %10 = arith.minimumf %8, %9 : vector<4x270xf32>
    %c0_8 = arith.constant 0 : index
    %c0_9 = arith.constant 0 : index
    %c0_10 = arith.constant 0 : index
    %11 = vector.load %arg5[%c0_8, %c0_9, %c0_10] : memref<1x4x270xf32, #tpu.memory_space<vmem>>, vector<1x4x270xf32>
    %12 = vector.shape_cast %11 : vector<1x4x270xf32> to vector<4x270xf32>
    %13 = vector.shape_cast %10 : vector<4x270xf32> to vector<1x4x270xf32>
    tpu.vector_store %arg5[%c0_8, %c0_9, %c0_10], %13 {strides = array<i32>} : memref<1x4x270xf32, #tpu.memory_space<vmem>>, vector<1x4x270xf32>,
    return
  }
  func.func @transform_0(%arg0: i32, %arg1: i32) -> (i32, i32) {
    %c0_i32 = arith.constant 0 : i32
    %c0_i32_0 = arith.constant 0 : i32
    %c0_i32_1 = arith.constant 0 : i32
    return %c0_i32, %c0_i32_0 : i32, i32
  }
  func.func @transform_1(%arg0: i32, %arg1: i32) -> (i32, i32) {
    %c0_i32 = arith.constant 0 : i32
    %c0_i32_0 = arith.constant 0 : i32
    %c0_i32_1 = arith.constant 0 : i32
    return %c0_i32, %c0_i32_0 : i32, i32
  }
  func.func @transform_2(%arg0: i32, %arg1: i32) -> (i32, i32, i32) {
    %c0_i32 = arith.constant 0 : i32
    %c0_i32_0 = arith.constant 0 : i32
    return %arg0, %c0_i32, %arg1 : i32, i32, i32
  }
  func.func @transform_3(%arg0: i32, %arg1: i32) -> (i32, i32, i32) {
    %c0_i32 = arith.constant 0 : i32
    %c0_i32_0 = arith.constant 0 : i32
    return %arg0, %c0_i32, %arg1 : i32, i32, i32
  }
}

</mosaic_0001>

<llo_original>
// kernel: conv2d_clamp.1
$region0: #{conv2d_clamp.1}
  #allocation0 [shape = 'u32[]', space=smem, size = 0x4, offset = 0x4, fixed_abs, tag = 'smem constant byte address 0x4 - core index']
  #allocation1 [shape = 'u32[144,128]{1,0:T(1,128)}', space=vmem, size = 0x12000, scoped, tag = 'internal scratch']
  %s0 = inlined_call_operand.vmem [shape: f32[4,300], index: 0, kind: input, shape index: {}]
  %s1 = inlined_call_operand.vmem [shape: f32[4,1], index: 1, kind: input, shape index: {}]
  %s2 = inlined_call_operand.vmem [shape: f32[1,300,270], index: 2, kind: input, shape index: {}]
  %s3 = inlined_call_operand.vmem [shape: f32[1,4,270], index: 3, kind: output, shape index: {}]
  %s4 = sld [smem:[#allocation0]]
  $region22: #{conv2d_clamp.1} parent=0
    _
  %s6 = ssub.s32 1, %s4
  %s7 = scalar_select 0, %s6, %s4
  // Predicated region
  $region2: #{conv2d_clamp.1} parent=0 // pred_check
    _
  $region3: #{conv2d_clamp.1} parent=0 // pred_check_branch
    %9 = sbr.rel (0) target = $region5
  $region4: #{conv2d_clamp.1} parent=0 // pred_region
    _
  $region5: #{conv2d_clamp.1} parent=0 // pred_fallthru
    _
  // Predicated region
  $region6: #{conv2d_clamp.1} parent=0 // pred_check
    _
  $region7: #{conv2d_clamp.1} parent=0 // pred_check_branch
    %11 = sbr.rel (0) target = $region9
  $region8: #{conv2d_clamp.1} parent=0 // pred_region
    _
  $region9: #{conv2d_clamp.1} parent=0 // pred_fallthru
    _
  // Predicated region
  $region10: #{conv2d_clamp.1} parent=0 // pred_check
    _
  $region11: #{conv2d_clamp.1} parent=0 // pred_check_branch
    %13 = sbr.rel (0) target = $region13
  $region12: #{conv2d_clamp.1} parent=0 // pred_region
    _
  $region13: #{conv2d_clamp.1} parent=0 // pred_fallthru
    _
  %v14 = vld [vmem:[%s0] sm:$0xff]
  %v15 = vld [vmem:[%s0 + $0x8] sm:$0xf]
  %v16 = vld [vmem:[%s2] sm:$0xff]
  %v17 = vld [vmem:[%s2 + $0x8] sm:$0xff]
  %v18 = vld [vmem:[%s2 + $0x10] sm:$0xff]
  %v19 = vld [vmem:[%s2 + $0x18] sm:$0xff]
  %v20 = vld [vmem:[%s2 + $0x20] sm:$0xff]
  %v21 = vld [vmem:[%s2 + $0x28] sm:$0xff]
  %v22 = vld [vmem:[%s2 + $0x30] sm:$0xff]
  %v23 = vld [vmem:[%s2 + $0x38] sm:$0xff]
  %v24 = vld [vmem:[%s2 + $0x40] sm:$0xff]
  %v25 = vld [vmem:[%s2 + $0x48] sm:$0xff]
  %v26 = vld [vmem:[%s2 + $0x50] sm:$0xff]
  %v27 = vld [vmem:[%s2 + $0x58] sm:$0xff]
  %v28 = vld [vmem:[%s2 + $0x60] sm:$0xff]
  %v29 = vld [vmem:[%s2 + $0x68] sm:$0xff]
  %v30 = vld [vmem:[%s2 + $0x70] sm:$0xff]
  %v31 = vld [vmem:[%s2 + $0x78] sm:$0xff]
  %v32 = vld [vmem:[%s2 + $0x80] sm:$0xff]
  %v33 = vld [vmem:[%s2 + $0x88] sm:$0xff]
  %v34 = vld [vmem:[%s2 + $0x90] sm:$0xff]
  %v35 = vld [vmem:[%s2 + $0x98] sm:$0xff]
  %v36 = vld [vmem:[%s2 + $0xa0] sm:$0xff]
  %v37 = vld [vmem:[%s2 + $0xa8] sm:$0xff]
  %v38 = vld [vmem:[%s2 + $0xb0] sm:$0xff]
  %v39 = vld [vmem:[%s2 + $0xb8] sm:$0xff]
  %v40 = vld [vmem:[%s2 + $0xc0] sm:$0xff]
  %v41 = vld [vmem:[%s2 + $0xc8] sm:$0xff]
  %v42 = vld [vmem:[%s2 + $0xd0] sm:$0xff]
  %v43 = vld [vmem:[%s2 + $0xd8] sm:$0xff]
  %v44 = vld [vmem:[%s2 + $0xe0] sm:$0xff]
  %v45 = vld [vmem:[%s2 + $0xe8] sm:$0xff]
  %v46 = vld [vmem:[%s2 + $0xf0] sm:$0xff]
  %v47 = vld [vmem:[%s2 + $0xf8] sm:$0xff]
  %v48 = vld [vmem:[%s2 + $0x100] sm:$0xff]
  %v49 = vld [vmem:[%s2 + $0x108] sm:$0xff]
  %v50 = vld [vmem:[%s2 + $0x110] sm:$0xff]
  %v51 = vld [vmem:[%s2 + $0x118] sm:$0xff]
  %v52 = vld [vmem:[%s2 + $0x120] sm:$0xff]
  %v53 = vld [vmem:[%s2 + $0x128] sm:$0xff]
  %v54 = vld [vmem:[%s2 + $0x130] sm:$0xff]
  %v55 = vld [vmem:[%s2 + $0x138] sm:$0xff]
  %v56 = vld [vmem:[%s2 + $0x140] sm:$0xff]
  %v57 = vld [vmem:[%s2 + $0x148] sm:$0xff]
  %v58 = vld [vmem:[%s2 + $0x150] sm:$0xff]
  %v59 = vld [vmem:[%s2 + $0x158] sm:$0xff]
  %v60 = vld [vmem:[%s2 + $0x160] sm:$0xff]
  %v61 = vld [vmem:[%s2 + $0x168] sm:$0xff]
  %v62 = vld [vmem:[%s2 + $0x170] sm:$0xff]
  %v63 = vld [vmem:[%s2 + $0x178] sm:$0xff]
  %v64 = vld [vmem:[%s2 + $0x180] sm:$0xff]
  %v65 = vld [vmem:[%s2 + $0x188] sm:$0xff]
  %v66 = vld [vmem:[%s2 + $0x190] sm:$0xff]
  %v67 = vld [vmem:[%s2 + $0x198] sm:$0xff]
  %v68 = vld [vmem:[%s2 + $0x1a0] sm:$0xff]
  %v69 = vld [vmem:[%s2 + $0x1a8] sm:$0xff]
  %v70 = vld [vmem:[%s2 + $0x1b0] sm:$0xff]
  %v71 = vld [vmem:[%s2 + $0x1b8] sm:$0xff]
  %v72 = vld [vmem:[%s2 + $0x1c0] sm:$0xff]
  %v73 = vld [vmem:[%s2 + $0x1c8] sm:$0xff]
  %v74 = vld [vmem:[%s2 + $0x1d0] sm:$0xff]
  %v75 = vld [vmem:[%s2 + $0x1d8] sm:$0xff]
  %v76 = vld [vmem:[%s2 + $0x1e0] sm:$0xff]
  %v77 = vld [vmem:[%s2 + $0x1e8] sm:$0xff]
  %v78 = vld [vmem:[%s2 + $0x1f0] sm:$0xff]
  %v79 = vld [vmem:[%s2 + $0x1f8] sm:$0xff]
  %v80 = vld [vmem:[%s2 + $0x200] sm:$0xff]
  %v81 = vld [vmem:[%s2 + $0x208] sm:$0xff]
  %v82 = vld [vmem:[%s2 + $0x210] sm:$0xff]
  %v83 = vld [vmem:[%s2 + $0x218] sm:$0xff]
  %v84 = vld [vmem:[%s2 + $0x220] sm:$0xff]
  %v85 = vld [vmem:[%s2 + $0x228] sm:$0xff]
  %v86 = vld [vmem:[%s2 + $0x230] sm:$0xff]
  %v87 = vld [vmem:[%s2 + $0x238] sm:$0xff]
  %v88 = vld [vmem:[%s2 + $0x240] sm:$0xff]
  %v89 = vld [vmem:[%s2 + $0x248] sm:$0xff]
  %v90 = vld [vmem:[%s2 + $0x250] sm:$0xff]
  %v91 = vld [vmem:[%s2 + $0x258] sm:$0xff]
  %v92 = vld [vmem:[%s2 + $0x260] sm:$0xff]
  %v93 = vld [vmem:[%s2 + $0x268] sm:$0xff]
  %v94 = vld [vmem:[%s2 + $0x270] sm:$0xff]
  %v95 = vld [vmem:[%s2 + $0x278] sm:$0xff]
  %v96 = vld [vmem:[%s2 + $0x280] sm:$0xff]
  %v97 = vld [vmem:[%s2 + $0x288] sm:$0xff]
  %v98 = vld [vmem:[%s2 + $0x290] sm:$0xff]
  %v99 = vld [vmem:[%s2 + $0x298] sm:$0xff]
  %v100 = vld [vmem:[%s2 + $0x2a0] sm:$0xff]
  %v101 = vld [vmem:[%s2 + $0x2a8] sm:$0xff]
  %v102 = vld [vmem:[%s2 + $0x2b0] sm:$0xff]
  %v103 = vld [vmem:[%s2 + $0x2b8] sm:$0xff]
  %v104 = vld [vmem:[%s2 + $0x2c0] sm:$0xff]
  %v105 = vld [vmem:[%s2 + $0x2c8] sm:$0xff]
  %v106 = vld [vmem:[%s2 + $0x2d0] sm:$0xff]
  %v107 = vld [vmem:[%s2 + $0x2d8] sm:$0xff]
  %v108 = vld [vmem:[%s2 + $0x2e0] sm:$0xff]
  %v109 = vld [vmem:[%s2 + $0x2e8] sm:$0xff]
  %v110 = vld [vmem:[%s2 + $0x2f0] sm:$0xff]
  %v111 = vld [vmem:[%s2 + $0x2f8] sm:$0xff]
  %v112 = vld [vmem:[%s2 + $0x300] sm:$0xff]
  %v113 = vld [vmem:[%s2 + $0x308] sm:$0xff]
  %v114 = vld [vmem:[%s2 + $0x310] sm:$0xff]
  %v115 = vld [vmem:[%s2 + $0x318] sm:$0xff]
  %v116 = vld [vmem:[%s2 + $0x320] sm:$0xff]
  %v117 = vld [vmem:[%s2 + $0x328] sm:$0xff]
  %v118 = vld [vmem:[%s2 + $0x330] sm:$0xff]
  %v119 = vld [vmem:[%s2 + $0x338] sm:$0xff]
  %v120 = vld [vmem:[%s2 + $0x340] sm:$0xff]
  %v121 = vld [vmem:[%s2 + $0x348] sm:$0xff]
  %v122 = vld [vmem:[%s2 + $0x350] sm:$0xff]
  %v123 = vld [vmem:[%s2 + $0x358] sm:$0xff]
  %v124 = vld [vmem:[%s2 + $0x360] sm:$0xff]
  %v125 = vld [vmem:[%s2 + $0x368] sm:$0xff]
  %v126 = vld [vmem:[%s2 + $0x370] sm:$0xff]
  %v127 = vld [vmem:[%s2 + $0x378] sm:$0xf]
  %v128 = vld [vmem:[%s2 + $0x380] sm:$0xf]
  %v129 = vld [vmem:[%s2 + $0x388] sm:$0xf]
  %v130 = vld [vmem:[%s1] sm:$0xf]
  %132 = vset.pattern.permute.xlu0 0
  %133 = vperm.xlu0 %132, %v130
  %v134 = vpop.permute.xlu0 %133
  %v138 = vcombine.high %v14, %v14
  %vm140 = vcmask 359424
  %v141 = vsel %vm140, %v15, 0
  %vm143 = vcmask 1043456
  %v145 = vsel %vm143, %v127, 0
  %v148 = vsel %vm143, %v128, 0
  %v151 = vsel %vm143, %v129, 0
  %153 = vmatprep.subr.mxu0 %v17
  %154 = vmatpush1.msra.mxu0 %v16
  %155 = vmatprep.subr.mxu0 %v20
  %156 = vmatpush1.msra.mxu0 %v19
  %157 = vmatprep.subr.mxu0 %v23
  %158 = vmatpush1.msra.mxu0 %v22
  %159 = vmatprep.subr.mxu0 %v26
  %160 = vmatpush1.msra.mxu0 %v25
  %161 = vmatprep.subr.mxu0 %v29
  %162 = vmatpush1.msra.mxu0 %v28
  %163 = vmatprep.subr.mxu0 %v32
  %164 = vmatpush1.msra.mxu0 %v31
  %165 = vmatprep.subr.mxu0 %v35
  %166 = vmatpush1.msra.mxu0 %v34
  %167 = vmatprep.subr.mxu0 %v38
  %168 = vmatpush1.msra.mxu0 %v37
  %169 = vmatprep.subr.mxu0 %v41
  %170 = vmatpush1.msra.mxu0 %v40
  %171 = vmatprep.subr.mxu0 %v44
  %172 = vmatpush1.msra.mxu0 %v43
  %173 = vmatprep.subr.mxu0 %v47
  %174 = vmatpush1.msra.mxu0 %v46
  %175 = vmatprep.subr.mxu0 %v50
  %176 = vmatpush1.msra.mxu0 %v49
  %177 = vmatprep.subr.mxu0 %v53
  %178 = vmatpush1.msra.mxu0 %v52
  %179 = vmatprep.subr.mxu0 %v56
  %180 = vmatpush1.msra.mxu0 %v55
  %181 = vmatprep.subr.mxu0 %v59
  %182 = vmatpush1.msra.mxu0 %v58
  %183 = vmatprep.subr.mxu0 %v62
  %184 = vmatpush1.msra.mxu0 %v61
  %185 = vmatprep.subr.mxu0 %v65
  %186 = vmatpush1.msra.mxu0 %v64
  %187 = vmatprep.subr.mxu0 %v68
  %188 = vmatpush1.msra.mxu0 %v67
  %189 = vmatprep.subr.mxu0 %v71
  %190 = vmatpush1.msra.mxu0 %v70
  %191 = vmatprep.subr.mxu0 %v74
  %192 = vmatpush1.msra.mxu0 %v73
  %193 = vmatprep.subr.mxu0 %v77
  %194 = vmatpush1.msra.mxu0 %v76
  %195 = vmatprep.subr.mxu0 %v80
  %196 = vmatpush1.msra.mxu0 %v79
  %197 = vmatprep.subr.mxu0 %v83
  %198 = vmatpush1.msra.mxu0 %v82
  %199 = vmatprep.subr.mxu0 %v86
  %200 = vmatpush1.msra.mxu0 %v85
  %201 = vmatprep.subr.mxu0 %v89
  %202 = vmatpush1.msra.mxu0 %v88
  %203 = vmatprep.subr.mxu0 %v92
  %204 = vmatpush1.msra.mxu0 %v91
  %205 = vmatprep.subr.mxu0 %v95
  %206 = vmatpush1.msra.mxu0 %v94
  %207 = vmatprep.subr.mxu0 %v98
  %208 = vmatpush1.msra.mxu0 %v97
  %209 = vmatprep.subr.mxu0 %v101
  %210 = vmatpush1.msra.mxu0 %v100
  %211 = vmatprep.subr.mxu0 %v104
  %212 = vmatpush1.msra.mxu0 %v103
  %213 = vmatprep.subr.mxu0 %v107
  %214 = vmatpush1.msra.mxu0 %v106
  %215 = vmatprep.subr.mxu0 %v110
  %216 = vmatpush1.msra.mxu0 %v109
  %217 = vmatprep.mubr.f32.mxu0 %v138
  %218 = vmatmul.mubr.f32.gmra.mrb[0].mxu0 %v14
  %v219 = vpop.f32.mrb[0].mxu0
  %v220 = vadd.f32 %v134, %v219
  %v221 = vpop.f32.mrb[0].mxu0
  %v222 = vadd.f32 %v134, %v221
  %223 = vdwg.mxu0
  %224 = vmatprep.subr.mxu0 %v113
  %225 = vmatpush1.msra.mxu0 %v112
  %226 = vmatprep.subr.mxu0 %v116
  %227 = vmatpush1.msra.mxu0 %v115
  %228 = vmatprep.subr.mxu0 %v119
  %229 = vmatpush1.msra.mxu0 %v118
  %230 = vmatprep.subr.mxu0 %v122
  %231 = vmatpush1.msra.mxu0 %v121
  %232 = vmatprep.subr.mxu0 %v125
  %233 = vmatpush1.msra.mxu0 %v124
  %234 = vmatprep.subr.mxu0 %v148
  %235 = vmatpush1.msra.mxu0 %v145
  %236 = vmatprep.subr.mxu0 0.0
  %237 = vmatpush1.msra.mxu0 0.0
  %238 = vmatprep.subr.mxu0 0.0
  %239 = vmatpush1.msra.mxu0 0.0
  %240 = vmatprep.subr.mxu0 0.0
  %241 = vmatpush1.msra.mxu0 0.0
  %242 = vmatprep.subr.mxu0 0.0
  %243 = vmatpush1.msra.mxu0 0.0
  %244 = vmatprep.subr.mxu0 0.0
  %245 = vmatpush1.msra.mxu0 0.0
  %246 = vmatprep.subr.mxu0 0.0
  %247 = vmatpush1.msra.mxu0 0.0
  %248 = vmatprep.subr.mxu0 0.0
  %249 = vmatpush1.msra.mxu0 0.0
  %250 = vmatprep.subr.mxu0 0.0
  %251 = vmatpush1.msra.mxu0 0.0
  %252 = vmatprep.subr.mxu0 0.0
  %253 = vmatpush1.msra.mxu0 0.0
  %254 = vmatprep.subr.mxu0 0.0
  %255 = vmatpush1.msra.mxu0 0.0
  %256 = vmatprep.subr.mxu0 0.0
  %257 = vmatpush1.msra.mxu0 0.0
  %258 = vmatprep.subr.mxu0 0.0
  %259 = vmatpush1.msra.mxu0 0.0
  %260 = vmatprep.subr.mxu0 0.0
  %261 = vmatpush1.msra.mxu0 0.0
  %262 = vmatprep.subr.mxu0 0.0
  %263 = vmatpush1.msra.mxu0 0.0
  %264 = vmatprep.subr.mxu0 0.0
  %265 = vmatpush1.msra.mxu0 0.0
  %266 = vmatprep.subr.mxu0 0.0
  %267 = vmatpush1.msra.mxu0 0.0
  %268 = vmatprep.subr.mxu0 0.0
  %269 = vmatpush1.msra.mxu0 0.0
  %270 = vmatprep.subr.mxu0 0.0
  %271 = vmatpush1.msra.mxu0 0.0
  %272 = vmatprep.subr.mxu0 0.0
  %273 = vmatpush1.msra.mxu0 0.0
  %274 = vmatprep.subr.mxu0 0.0
  %275 = vmatpush1.msra.mxu0 0.0
  %276 = vmatprep.subr.mxu0 0.0
  %277 = vmatpush1.msra.mxu0 0.0
  %278 = vmatprep.subr.mxu0 0.0
  %279 = vmatpush1.msra.mxu0 0.0
  %280 = vmatprep.subr.mxu0 0.0
  %281 = vmatpush1.msra.mxu0 0.0
  %282 = vmatprep.subr.mxu0 0.0
  %283 = vmatpush1.msra.mxu0 0.0
  %284 = vmatprep.subr.mxu0 0.0
  %285 = vmatpush1.msra.mxu0 0.0
  %286 = vmatprep.subr.mxu0 0.0
  %287 = vmatpush1.msra.mxu0 0.0
  %288 = vmatprep.mubr.f32.mxu0 0.0
  %289 = vmatmul.mubr.f32.gmra.mrb[0].mxu0 %v141
  %v290 = vpop.f32.mrb[0].mxu0
  %v291 = vadd.f32 %v220, %v290
  %v292 = vpop.f32.mrb[0].mxu0
  %v293 = vadd.f32 %v222, %v292
  %294 = vdwg.mxu0
  %295 = vmatprep.subr.mxu0 0.0
  %296 = vmatpush1.msra.mxu0 %v18
  %297 = vmatprep.subr.mxu0 0.0
  %298 = vmatpush1.msra.mxu0 %v21
  %299 = vmatprep.subr.mxu0 0.0
  %300 = vmatpush1.msra.mxu0 %v24
  %301 = vmatprep.subr.mxu0 0.0
  %302 = vmatpush1.msra.mxu0 %v27
  %303 = vmatprep.subr.mxu0 0.0
  %304 = vmatpush1.msra.mxu0 %v30
  %305 = vmatprep.subr.mxu0 0.0
  %306 = vmatpush1.msra.mxu0 %v33
  %307 = vmatprep.subr.mxu0 0.0
  %308 = vmatpush1.msra.mxu0 %v36
  %309 = vmatprep.subr.mxu0 0.0
  %310 = vmatpush1.msra.mxu0 %v39
  %311 = vmatprep.subr.mxu0 0.0
  %312 = vmatpush1.msra.mxu0 %v42
  %313 = vmatprep.subr.mxu0 0.0
  %314 = vmatpush1.msra.mxu0 %v45
  %315 = vmatprep.subr.mxu0 0.0
  %316 = vmatpush1.msra.mxu0 %v48
  %317 = vmatprep.subr.mxu0 0.0
  %318 = vmatpush1.msra.mxu0 %v51
  %319 = vmatprep.subr.mxu0 0.0
  %320 = vmatpush1.msra.mxu0 %v54
  %321 = vmatprep.subr.mxu0 0.0
  %322 = vmatpush1.msra.mxu0 %v57
  %323 = vmatprep.subr.mxu0 0.0
  %324 = vmatpush1.msra.mxu0 %v60
  %325 = vmatprep.subr.mxu0 0.0
  %326 = vmatpush1.msra.mxu0 %v63
  %327 = vmatprep.subr.mxu0 0.0
  %328 = vmatpush1.msra.mxu0 %v66
  %329 = vmatprep.subr.mxu0 0.0
  %330 = vmatpush1.msra.mxu0 %v69
  %331 = vmatprep.subr.mxu0 0.0
  %332 = vmatpush1.msra.mxu0 %v72
  %333 = vmatprep.subr.mxu0 0.0
  %334 = vmatpush1.msra.mxu0 %v75
  %335 = vmatprep.subr.mxu0 0.0
  %336 = vmatpush1.msra.mxu0 %v78
  %337 = vmatprep.subr.mxu0 0.0
  %338 = vmatpush1.msra.mxu0 %v81
  %339 = vmatprep.subr.mxu0 0.0
  %340 = vmatpush1.msra.mxu0 %v84
  %341 = vmatprep.subr.mxu0 0.0
  %342 = vmatpush1.msra.mxu0 %v87
  %343 = vmatprep.subr.mxu0 0.0
  %344 = vmatpush1.msra.mxu0 %v90
  %345 = vmatprep.subr.mxu0 0.0
  %346 = vmatpush1.msra.mxu0 %v93
  %347 = vmatprep.subr.mxu0 0.0
  %348 = vmatpush1.msra.mxu0 %v96
  %349 = vmatprep.subr.mxu0 0.0
  %350 = vmatpush1.msra.mxu0 %v99
  %351 = vmatprep.subr.mxu0 0.0
  %352 = vmatpush1.msra.mxu0 %v102
  %353 = vmatprep.subr.mxu0 0.0
  %354 = vmatpush1.msra.mxu0 %v105
  %355 = vmatprep.subr.mxu0 0.0
  %356 = vmatpush1.msra.mxu0 %v108
  %357 = vmatprep.subr.mxu0 0.0
  %358 = vmatpush1.msra.mxu0 %v111
  %359 = vmatprep.mubr.f32.mxu0 %v138
  %360 = vmatmul.mubr.f32.gmra.mrb[0].mxu0 %v14
  %v361 = vpop.f32.mrb[0].mxu0
  %v362 = vadd.f32 %v134, %v361
  %v363 = vpop.f32.mrb[0].mxu0
  %364 = vdwg.mxu0
  %365 = vmatprep.subr.mxu0 0.0
  %366 = vmatpush1.msra.mxu0 %v114
  %367 = vmatprep.subr.mxu0 0.0
  %368 = vmatpush1.msra.mxu0 %v117
  %369 = vmatprep.subr.mxu0 0.0
  %370 = vmatpush1.msra.mxu0 %v120
  %371 = vmatprep.subr.mxu0 0.0
  %372 = vmatpush1.msra.mxu0 %v123
  %373 = vmatprep.subr.mxu0 0.0
  %374 = vmatpush1.msra.mxu0 %v126
  %375 = vmatprep.subr.mxu0 0.0
  %376 = vmatpush1.msra.mxu0 %v151
  %377 = vmatprep.subr.mxu0 0.0
  %378 = vmatpush1.msra.mxu0 0.0
  %379 = vmatprep.subr.mxu0 0.0
  %380 = vmatpush1.msra.mxu0 0.0
  %381 = vmatprep.subr.mxu0 0.0
  %382 = vmatpush1.msra.mxu0 0.0
  %383 = vmatprep.subr.mxu0 0.0
  %384 = vmatpush1.msra.mxu0 0.0
  %385 = vmatprep.subr.mxu0 0.0
  %386 = vmatpush1.msra.mxu0 0.0
  %387 = vmatprep.subr.mxu0 0.0
  %388 = vmatpush1.msra.mxu0 0.0
  %389 = vmatprep.subr.mxu0 0.0
  %390 = vmatpush1.msra.mxu0 0.0
  %391 = vmatprep.subr.mxu0 0.0
  %392 = vmatpush1.msra.mxu0 0.0
  %393 = vmatprep.subr.mxu0 0.0
  %394 = vmatpush1.msra.mxu0 0.0
  %395 = vmatprep.subr.mxu0 0.0
  %396 = vmatpush1.msra.mxu0 0.0
  %397 = vmatprep.subr.mxu0 0.0
  %398 = vmatpush1.msra.mxu0 0.0
  %399 = vmatprep.subr.mxu0 0.0
  %400 = vmatpush1.msra.mxu0 0.0
  %401 = vmatprep.subr.mxu0 0.0
  %402 = vmatpush1.msra.mxu0 0.0
  %403 = vmatprep.subr.mxu0 0.0
  %404 = vmatpush1.msra.mxu0 0.0
  %405 = vmatprep.subr.mxu0 0.0
  %406 = vmatpush1.msra.mxu0 0.0
  %407 = vmatprep.subr.mxu0 0.0
  %408 = vmatpush1.msra.mxu0 0.0
  %409 = vmatprep.subr.mxu0 0.0
  %410 = vmatpush1.msra.mxu0 0.0
  %411 = vmatprep.subr.mxu0 0.0
  %412 = vmatpush1.msra.mxu0 0.0
  %413 = vmatprep.subr.mxu0 0.0
  %414 = vmatpush1.msra.mxu0 0.0
  %415 = vmatprep.subr.mxu0 0.0
  %416 = vmatpush1.msra.mxu0 0.0
  %417 = vmatprep.subr.mxu0 0.0
  %418 = vmatpush1.msra.mxu0 0.0
  %419 = vmatprep.subr.mxu0 0.0
  %420 = vmatpush1.msra.mxu0 0.0
  %421 = vmatprep.subr.mxu0 0.0
  %422 = vmatpush1.msra.mxu0 0.0
  %423 = vmatprep.subr.mxu0 0.0
  %424 = vmatpush1.msra.mxu0 0.0
  %425 = vmatprep.subr.mxu0 0.0
  %426 = vmatpush1.msra.mxu0 0.0
  %427 = vmatprep.subr.mxu0 0.0
  %428 = vmatpush1.msra.mxu0 0.0
  %429 = vmatprep.mubr.f32.mxu0 0.0
  %430 = vmatmul.mubr.f32.gmra.mrb[0].mxu0 %v141
  %v431 = vpop.f32.mrb[0].mxu0
  %v432 = vadd.f32 %v362, %v431
  %v433 = vpop.f32.mrb[0].mxu0
  %434 = vdwg.mxu0
  %v435 = vmax.f32 %v291, 0.9
  %v436 = vmax.f32 %v293, 0.9
  %v437 = vmax.f32 %v432, 0.9
  %v438 = vmin.f32 %v435, 0.8
  %v439 = vmin.f32 %v436, 0.8
  %v440 = vmin.f32 %v437, 0.8
  %v443 = vcombine.low %v438, %v439
  %445 = vst [vmem:[%s3] sm:$0xff] %v443
  %vm446 = vcmask 109568
  %447 = vst.msk [vmem:[%s3 + $0x8] sm:$0xf] %vm446, %v440
  // Predicated region
  $region14: #{conv2d_clamp.1} parent=0 // pred_check
    _
  $region15: #{conv2d_clamp.1} parent=0 // pred_check_branch
    %449 = sbr.rel (0) target = $region17
  $region16: #{conv2d_clamp.1} parent=0 // pred_region
    _
  $region17: #{conv2d_clamp.1} parent=0 // pred_fallthru
    _
  // Predicated region
  $region18: #{conv2d_clamp.1} parent=0 // pred_check
    _
  $region19: #{conv2d_clamp.1} parent=0 // pred_check_branch
    %451 = sbr.rel (0) target = $region21
  $region20: #{conv2d_clamp.1} parent=0 // pred_region
    _
  $region21: #{conv2d_clamp.1} parent=0 // pred_fallthru
    _

</llo_original>
